<compile_context>
chip_gen: v7x
topology: tpu7x:2x2x1
jax: 0.10.0
libtpu: 0.0.40
codegen_flags: <defaults>
</compile_context>

<pallas_src>
import jax
import jax.numpy as jnp
from jax.experimental import pallas as pl
from jax.experimental.pallas import tpu as pltpu

HIDDEN = 104          # logical hidden width (matches PyTorch default)
HIDDEN_PAD = 128      # lane-aligned padded hidden width
RRELU_SLOPE = (1.0 / 8.0 + 1.0 / 3.0) / 2.0  # eval-mode RReLU negative slope
HARDSHRINK_LAMBDA = 0.5
ELU_ALPHA = 1.0


# ----------------------------- activations (f32) -----------------------------

def _rrelu(x):
    # eval-mode RReLU == leaky relu with slope (lower+upper)/2
    return jnp.where(x >= 0, x, RRELU_SLOPE * x)


def _silu_kernel(x):
    # sigmoid via EUP exp + EUP approximate reciprocal (kernel-only)
    return x * pl.reciprocal(1.0 + jnp.exp(-x), approx=True)


def _silu_ref(x):
    return x * (1.0 / (1.0 + jnp.exp(-x)))


def _elu(x):
    # exp(min(x, 0)) keeps the exp argument bounded
    return jnp.where(x > 0, x, ELU_ALPHA * (jnp.exp(jnp.minimum(x, 0.0)) - 1.0))


def _hardshrink(x):
    return jnp.where(jnp.abs(x) > HARDSHRINK_LAMBDA, x, 0.0)


# --------------------------------- kernel ------------------------------------

def mlp_kernel(x_ref,
               w1, b1, w2, b2, w3, b3, w4, b4,
               w5, b5, w6, b6, w7, b7, w8, b8,
               out_ref):
    def dense(h, w_ref, b_ref):
        # Weights are already bf16 at rest; only the activations are cast at
        # the MXU input.  f32 accumulation, f32 bias add.
        return jnp.dot(h.astype(jnp.bfloat16), w_ref[...],
                       preferred_element_type=jnp.float32) + b_ref[...]

    h = x_ref[...]                       # bf16 input tile
    h = _rrelu(dense(h, w1, b1))
    h = _silu_kernel(dense(h, w2, b2))
    h = _elu(dense(h, w3, b3))
    h = _elu(dense(h, w4, b4))
    h = _hardshrink(dense(h, w5, b5))
    h = _hardshrink(dense(h, w6, b6))
    h = _hardshrink(dense(h, w7, b7))
    out_ref[...] = dense(h, w8, b8).astype(out_ref.dtype)


# ------------------------------ params / wrapper ------------------------------

def init_params(key, input_features, output_features,
                hidden_units=HIDDEN, hidden_pad=HIDDEN_PAD):
    """PyTorch-style uniform init on the *logical* shapes, zero-padded to
    lane-aligned shapes.  Weights are stored transposed vs. torch (in, out)
    and kept in bf16 at rest; biases stay f32."""
    logical = [input_features] + [hidden_units] * 7 + [output_features]
    padded = [input_features] + [hidden_pad] * 7 + [output_features]
    params = []
    for layer in range(8):
        fan_in, fan_out = logical[layer], logical[layer + 1]
        pin, pout = padded[layer], padded[layer + 1]
        kw, kb, key = jax.random.split(key, 3)
        bound = float(fan_in) ** -0.5
        w = jax.random.uniform(kw, (fan_in, fan_out), jnp.float32, -bound, bound)
        b = jax.random.uniform(kb, (1, fan_out), jnp.float32, -bound, bound)
        w_pad = jnp.zeros((pin, pout), jnp.bfloat16)
        w_pad = w_pad.at[:fan_in, :fan_out].set(w.astype(jnp.bfloat16))
        b_pad = jnp.zeros((1, pout), jnp.float32).at[:, :fan_out].set(b)
        params += [w_pad, b_pad]
    return params


def _round_up(n, m):
    return ((n + m - 1) // m) * m


@jax.jit
def multiple_linear_regression(x, *params):
    batch, feat = x.shape
    out_features = params[-1].shape[-1]

    # Batch tile: large (up to 1024) so ~0.35 us per-step overhead is amortized
    # and the resident bf16 weights are re-used across many LHS rows; shrunk to
    # a multiple of 8 for tiny batches so we don't pad 8 -> 1024.
    tile_b = min(1024, _round_up(batch, 8))
    # v7x has 2 TensorCores: whenever there is enough work to split, make sure
    # the parallel batch axis has >= 2 grid steps so both cores get a share.
    if batch >= 16 and _round_up(batch, tile_b) // tile_b < 2:
        tile_b = _round_up(pl.cdiv(batch, 2), 8)
    padded_batch = _round_up(batch, tile_b)

    # Cast x to bf16 once here (halves x DMA); pad the batch to the tile.
    x = x.astype(jnp.bfloat16)
    if padded_batch != batch:
        x = jnp.pad(x, ((0, padded_batch - batch), (0, 0)))
    grid = (padded_batch // tile_b,)

    in_specs = [pl.BlockSpec((tile_b, feat), lambda i: (i, 0))]
    # Weights / biases: full-array blocks with a constant index_map so they are
    # DMA'd once and stay resident in VMEM across all batch tiles.
    in_specs += [pl.BlockSpec(p.shape, lambda i: (0, 0)) for p in params]

    out = pl.pallas_call(
        mlp_kernel,
        out_shape=jax.ShapeDtypeStruct((padded_batch, out_features), jnp.float32),
        grid=grid,
        in_specs=in_specs,
        out_specs=pl.BlockSpec((tile_b, out_features), lambda i: (i, 0)),
        compiler_params=pltpu.CompilerParams(
            dimension_semantics=("parallel",)),
    )(x, *params)
    return out[:batch]


# ------------------------------ pure-JAX reference ----------------------------

def reference_forward(x, *params, hidden_units=HIDDEN):
    """f32 reference on the *logical* (unpadded) slices of the stored weights —
    checks both the math and that the zero-padding is transparent."""
    acts = [_rrelu, _silu_ref, _elu, _elu,
            _hardshrink, _hardshrink, _hardshrink, None]
    h = x.astype(jnp.float32)
    in_dim = x.shape[1]
    for i, act in enumerate(acts):
        w, b = params[2 * i], params[2 * i + 1]
        out_dim = hidden_units if i < 7 else w.shape[1]
        h = h @ w[:in_dim, :out_dim].astype(jnp.float32) + b[:, :out_dim]
        if act is not None:
            h = act(h)
        in_dim = out_dim
    return h


if __name__ == "__main__":
    key = jax.random.PRNGKey(0)
    kx, kp = jax.random.split(key)

    batch = 8
    input_features = 16
    output_features = 4

    x = jax.random.normal(kx, (batch, input_features), dtype=jnp.float32)
    params = init_params(kp, input_features, output_features)

    out = jax.block_until_ready(multiple_linear_regression(x, *params))

    ref = reference_forward(x, *params)
    assert out.shape == (batch, output_features)
    # bf16 weights/MXU inputs + approximate-reciprocal sigmoid vs. f32 reference.
    assert jnp.allclose(out, ref, atol=2e-2, rtol=2e-2), "mismatch vs reference"

    # TODO(synk): RReLU uses the deterministic eval-mode slope; training-mode
    # random slopes have no per-element Pallas equivalent here.
    print("KERNEL_OK")
</pallas_src>

<mosaic_0001>
module attributes {stable_mosaic.version = 11 : i64} {
  func.func @mlp_kernel(%arg0: i32, %arg1: memref<8x16xbf16, #tpu.memory_space<vmem>>, %arg2: memref<16x128xbf16, #tpu.memory_space<vmem>>, %arg3: memref<1x128xf32, #tpu.memory_space<vmem>>, %arg4: memref<128x128xbf16, #tpu.memory_space<vmem>>, %arg5: memref<1x128xf32, #tpu.memory_space<vmem>>, %arg6: memref<128x128xbf16, #tpu.memory_space<vmem>>, %arg7: memref<1x128xf32, #tpu.memory_space<vmem>>, %arg8: memref<128x128xbf16, #tpu.memory_space<vmem>>, %arg9: memref<1x128xf32, #tpu.memory_space<vmem>>, %arg10: memref<128x128xbf16, #tpu.memory_space<vmem>>, %arg11: memref<1x128xf32, #tpu.memory_space<vmem>>, %arg12: memref<128x128xbf16, #tpu.memory_space<vmem>>, %arg13: memref<1x128xf32, #tpu.memory_space<vmem>>, %arg14: memref<128x128xbf16, #tpu.memory_space<vmem>>, %arg15: memref<1x128xf32, #tpu.memory_space<vmem>>, %arg16: memref<128x4xbf16, #tpu.memory_space<vmem>>, %arg17: memref<1x4xf32, #tpu.memory_space<vmem>>, %arg18: memref<8x4xf32, #tpu.memory_space<vmem>>) attributes {dimension_semantics = [#tpu.dimension_semantics<parallel>], iteration_bounds = array<i64: 1>, scalar_prefetch = 0 : i64, scratch_operands = 0 : i64, tpu.core_type = #tpu.core_type<tc>, window_params = [{transform_indices = @transform_0, window_bounds = array<i64: 8, 16>}, {pipeline_mode = #tpu.pipeline_mode<synchronous>, transform_indices = @transform_1, window_bounds = array<i64: 16, 128>}, {pipeline_mode = #tpu.pipeline_mode<synchronous>, transform_indices = @transform_2, window_bounds = array<i64: 1, 128>}, {pipeline_mode = #tpu.pipeline_mode<synchronous>, transform_indices = @transform_3, window_bounds = array<i64: 128, 128>}, {pipeline_mode = #tpu.pipeline_mode<synchronous>, transform_indices = @transform_4, window_bounds = array<i64: 1, 128>}, {pipeline_mode = #tpu.pipeline_mode<synchronous>, transform_indices = @transform_5, window_bounds = array<i64: 128, 128>}, {pipeline_mode = #tpu.pipeline_mode<synchronous>, transform_indices = @transform_6, window_bounds = array<i64: 1, 128>}, {pipeline_mode = #tpu.pipeline_mode<synchronous>, transform_indices = @transform_7, window_bounds = array<i64: 128, 128>}, {pipeline_mode = #tpu.pipeline_mode<synchronous>, transform_indices = @transform_8, window_bounds = array<i64: 1, 128>}, {pipeline_mode = #tpu.pipeline_mode<synchronous>, transform_indices = @transform_9, window_bounds = array<i64: 128, 128>}, {pipeline_mode = #tpu.pipeline_mode<synchronous>, transform_indices = @transform_10, window_bounds = array<i64: 1, 128>}, {pipeline_mode = #tpu.pipeline_mode<synchronous>, transform_indices = @transform_11, window_bounds = array<i64: 128, 128>}, {pipeline_mode = #tpu.pipeline_mode<synchronous>, transform_indices = @transform_12, window_bounds = array<i64: 1, 128>}, {pipeline_mode = #tpu.pipeline_mode<synchronous>, transform_indices = @transform_13, window_bounds = array<i64: 128, 128>}, {pipeline_mode = #tpu.pipeline_mode<synchronous>, transform_indices = @transform_14, window_bounds = array<i64: 1, 128>}, {pipeline_mode = #tpu.pipeline_mode<synchronous>, transform_indices = @transform_15, window_bounds = array<i64: 128, 4>}, {pipeline_mode = #tpu.pipeline_mode<synchronous>, transform_indices = @transform_16, window_bounds = array<i64: 1, 4>}, {transform_indices = @transform_17, window_bounds = array<i64: 8, 4>}]} {
    %c0 = arith.constant 0 : index
    %c0_0 = arith.constant 0 : index
    %0 = vector.load %arg1[%c0, %c0_0] : memref<8x16xbf16, #tpu.memory_space<vmem>>, vector<8x16xbf16>
    %c0_1 = arith.constant 0 : index
    %c0_2 = arith.constant 0 : index
    %1 = vector.load %arg2[%c0_1, %c0_2] : memref<16x128xbf16, #tpu.memory_space<vmem>>, vector<16x128xbf16>
    %cst = arith.constant dense<0.000000e+00> : vector<8x128xf32>
    %2 = tpu.matmul %0, %1, %cst {dimension_numbers = #tpu.dot_dimension_numbers<[1], [0], [0], [1], [0, 0, 1, 1], [], []>} : vector<8x16xbf16>, vector<16x128xbf16>, vector<8x128xf32> -> vector<8x128xf32>
    %c0_3 = arith.constant 0 : index
    %c0_4 = arith.constant 0 : index
    %3 = vector.load %arg3[%c0_3, %c0_4] : memref<1x128xf32, #tpu.memory_space<vmem>>, vector<1x128xf32>
    %4 = vector.broadcast %3 : vector<1x128xf32> to vector<8x128xf32>
    %5 = arith.addf %2, %4 : vector<8x128xf32>
    %cst_5 = arith.constant 0.000000e+00 : f32
    %6 = vector.broadcast %cst_5 : f32 to vector<8x128xf32>
    %7 = arith.cmpf oge, %5, %6 : vector<8x128xf32>
    %cst_6 = arith.constant 0.229166672 : f32
    %8 = vector.broadcast %cst_6 : f32 to vector<8x128xf32>
    %9 = arith.mulf %8, %5 : vector<8x128xf32>
    %10 = arith.select %7, %5, %9 : vector<8x128xi1>, vector<8x128xf32>
    %11 = arith.truncf %10 : vector<8x128xf32> to vector<8x128xbf16>
    %c0_7 = arith.constant 0 : index
    %c0_8 = arith.constant 0 : index
    %12 = vector.load %arg4[%c0_7, %c0_8] : memref<128x128xbf16, #tpu.memory_space<vmem>>, vector<128x128xbf16>
    %cst_9 = arith.constant dense<0.000000e+00> : vector<8x128xf32>
    %13 = tpu.matmul %11, %12, %cst_9 {dimension_numbers = #tpu.dot_dimension_numbers<[1], [0], [0], [1], [0, 0, 1, 1], [], []>} : vector<8x128xbf16>, vector<128x128xbf16>, vector<8x128xf32> -> vector<8x128xf32>
    %c0_10 = arith.constant 0 : index
    %c0_11 = arith.constant 0 : index
    %14 = vector.load %arg5[%c0_10, %c0_11] : memref<1x128xf32, #tpu.memory_space<vmem>>, vector<1x128xf32>
    %15 = vector.broadcast %14 : vector<1x128xf32> to vector<8x128xf32>
    %16 = arith.addf %13, %15 : vector<8x128xf32>
    %cst_12 = arith.constant 0.000000e+00 : f32
    %17 = vector.broadcast %cst_12 : f32 to vector<8x128xf32>
    %18 = arith.subf %17, %16 : vector<8x128xf32>
    %19 = math.exp %18 : vector<8x128xf32>
    %cst_13 = arith.constant 1.000000e+00 : f32
    %20 = vector.broadcast %cst_13 : f32 to vector<8x128xf32>
    %21 = arith.addf %20, %19 : vector<8x128xf32>
    %22 = tpu.reciprocal %21 {approx = true} : vector<8x128xf32> -> vector<8x128xf32>
    %23 = arith.mulf %16, %22 : vector<8x128xf32>
    %24 = arith.truncf %23 : vector<8x128xf32> to vector<8x128xbf16>
    %c0_14 = arith.constant 0 : index
    %c0_15 = arith.constant 0 : index
    %25 = vector.load %arg6[%c0_14, %c0_15] : memref<128x128xbf16, #tpu.memory_space<vmem>>, vector<128x128xbf16>
    %cst_16 = arith.constant dense<0.000000e+00> : vector<8x128xf32>
    %26 = tpu.matmul %24, %25, %cst_16 {dimension_numbers = #tpu.dot_dimension_numbers<[1], [0], [0], [1], [0, 0, 1, 1], [], []>} : vector<8x128xbf16>, vector<128x128xbf16>, vector<8x128xf32> -> vector<8x128xf32>
    %c0_17 = arith.constant 0 : index
    %c0_18 = arith.constant 0 : index
    %27 = vector.load %arg7[%c0_17, %c0_18] : memref<1x128xf32, #tpu.memory_space<vmem>>, vector<1x128xf32>
    %28 = vector.broadcast %27 : vector<1x128xf32> to vector<8x128xf32>
    %29 = arith.addf %26, %28 : vector<8x128xf32>
    %cst_19 = arith.constant 0.000000e+00 : f32
    %30 = vector.broadcast %cst_19 : f32 to vector<8x128xf32>
    %31 = arith.cmpf ogt, %29, %30 : vector<8x128xf32>
    %cst_20 = arith.constant 0.000000e+00 : f32
    %32 = vector.broadcast %cst_20 : f32 to vector<8x128xf32>
    %33 = arith.minimumf %29, %32 : vector<8x128xf32>
    %34 = math.exp %33 : vector<8x128xf32>
    %cst_21 = arith.constant 1.000000e+00 : f32
    %35 = vector.broadcast %cst_21 : f32 to vector<8x128xf32>
    %36 = arith.subf %34, %35 : vector<8x128xf32>
    %cst_22 = arith.constant 1.000000e+00 : f32
    %37 = vector.broadcast %cst_22 : f32 to vector<8x128xf32>
    %38 = arith.mulf %37, %36 : vector<8x128xf32>
    %39 = arith.select %31, %29, %38 : vector<8x128xi1>, vector<8x128xf32>
    %40 = arith.truncf %39 : vector<8x128xf32> to vector<8x128xbf16>
    %c0_23 = arith.constant 0 : index
    %c0_24 = arith.constant 0 : index
    %41 = vector.load %arg8[%c0_23, %c0_24] : memref<128x128xbf16, #tpu.memory_space<vmem>>, vector<128x128xbf16>
    %cst_25 = arith.constant dense<0.000000e+00> : vector<8x128xf32>
    %42 = tpu.matmul %40, %41, %cst_25 {dimension_numbers = #tpu.dot_dimension_numbers<[1], [0], [0], [1], [0, 0, 1, 1], [], []>} : vector<8x128xbf16>, vector<128x128xbf16>, vector<8x128xf32> -> vector<8x128xf32>
    %c0_26 = arith.constant 0 : index
    %c0_27 = arith.constant 0 : index
    %43 = vector.load %arg9[%c0_26, %c0_27] : memref<1x128xf32, #tpu.memory_space<vmem>>, vector<1x128xf32>
    %44 = vector.broadcast %43 : vector<1x128xf32> to vector<8x128xf32>
    %45 = arith.addf %42, %44 : vector<8x128xf32>
    %cst_28 = arith.constant 0.000000e+00 : f32
    %46 = vector.broadcast %cst_28 : f32 to vector<8x128xf32>
    %47 = arith.cmpf ogt, %45, %46 : vector<8x128xf32>
    %cst_29 = arith.constant 0.000000e+00 : f32
    %48 = vector.broadcast %cst_29 : f32 to vector<8x128xf32>
    %49 = arith.minimumf %45, %48 : vector<8x128xf32>
    %50 = math.exp %49 : vector<8x128xf32>
    %cst_30 = arith.constant 1.000000e+00 : f32
    %51 = vector.broadcast %cst_30 : f32 to vector<8x128xf32>
    %52 = arith.subf %50, %51 : vector<8x128xf32>
    %cst_31 = arith.constant 1.000000e+00 : f32
    %53 = vector.broadcast %cst_31 : f32 to vector<8x128xf32>
    %54 = arith.mulf %53, %52 : vector<8x128xf32>
    %55 = arith.select %47, %45, %54 : vector<8x128xi1>, vector<8x128xf32>
    %56 = arith.truncf %55 : vector<8x128xf32> to vector<8x128xbf16>
    %c0_32 = arith.constant 0 : index
    %c0_33 = arith.constant 0 : index
    %57 = vector.load %arg10[%c0_32, %c0_33] : memref<128x128xbf16, #tpu.memory_space<vmem>>, vector<128x128xbf16>
    %cst_34 = arith.constant dense<0.000000e+00> : vector<8x128xf32>
    %58 = tpu.matmul %56, %57, %cst_34 {dimension_numbers = #tpu.dot_dimension_numbers<[1], [0], [0], [1], [0, 0, 1, 1], [], []>} : vector<8x128xbf16>, vector<128x128xbf16>, vector<8x128xf32> -> vector<8x128xf32>
    %c0_35 = arith.constant 0 : index
    %c0_36 = arith.constant 0 : index
    %59 = vector.load %arg11[%c0_35, %c0_36] : memref<1x128xf32, #tpu.memory_space<vmem>>, vector<1x128xf32>
    %60 = vector.broadcast %59 : vector<1x128xf32> to vector<8x128xf32>
    %61 = arith.addf %58, %60 : vector<8x128xf32>
    %62 = math.absf %61 : vector<8x128xf32>
    %cst_37 = arith.constant 5.000000e-01 : f32
    %63 = vector.broadcast %cst_37 : f32 to vector<8x128xf32>
    %64 = arith.cmpf ogt, %62, %63 : vector<8x128xf32>
    %cst_38 = arith.constant 0.000000e+00 : f32
    %65 = vector.broadcast %cst_38 : f32 to vector<8x128xf32>
    %66 = arith.select %64, %61, %65 : vector<8x128xi1>, vector<8x128xf32>
    %67 = arith.truncf %66 : vector<8x128xf32> to vector<8x128xbf16>
    %c0_39 = arith.constant 0 : index
    %c0_40 = arith.constant 0 : index
    %68 = vector.load %arg12[%c0_39, %c0_40] : memref<128x128xbf16, #tpu.memory_space<vmem>>, vector<128x128xbf16>
    %cst_41 = arith.constant dense<0.000000e+00> : vector<8x128xf32>
    %69 = tpu.matmul %67, %68, %cst_41 {dimension_numbers = #tpu.dot_dimension_numbers<[1], [0], [0], [1], [0, 0, 1, 1], [], []>} : vector<8x128xbf16>, vector<128x128xbf16>, vector<8x128xf32> -> vector<8x128xf32>
    %c0_42 = arith.constant 0 : index
    %c0_43 = arith.constant 0 : index
    %70 = vector.load %arg13[%c0_42, %c0_43] : memref<1x128xf32, #tpu.memory_space<vmem>>, vector<1x128xf32>
    %71 = vector.broadcast %70 : vector<1x128xf32> to vector<8x128xf32>
    %72 = arith.addf %69, %71 : vector<8x128xf32>
    %73 = math.absf %72 : vector<8x128xf32>
    %cst_44 = arith.constant 5.000000e-01 : f32
    %74 = vector.broadcast %cst_44 : f32 to vector<8x128xf32>
    %75 = arith.cmpf ogt, %73, %74 : vector<8x128xf32>
    %cst_45 = arith.constant 0.000000e+00 : f32
    %76 = vector.broadcast %cst_45 : f32 to vector<8x128xf32>
    %77 = arith.select %75, %72, %76 : vector<8x128xi1>, vector<8x128xf32>
    %78 = arith.truncf %77 : vector<8x128xf32> to vector<8x128xbf16>
    %c0_46 = arith.constant 0 : index
    %c0_47 = arith.constant 0 : index
    %79 = vector.load %arg14[%c0_46, %c0_47] : memref<128x128xbf16, #tpu.memory_space<vmem>>, vector<128x128xbf16>
    %cst_48 = arith.constant dense<0.000000e+00> : vector<8x128xf32>
    %80 = tpu.matmul %78, %79, %cst_48 {dimension_numbers = #tpu.dot_dimension_numbers<[1], [0], [0], [1], [0, 0, 1, 1], [], []>} : vector<8x128xbf16>, vector<128x128xbf16>, vector<8x128xf32> -> vector<8x128xf32>
    %c0_49 = arith.constant 0 : index
    %c0_50 = arith.constant 0 : index
    %81 = vector.load %arg15[%c0_49, %c0_50] : memref<1x128xf32, #tpu.memory_space<vmem>>, vector<1x128xf32>
    %82 = vector.broadcast %81 : vector<1x128xf32> to vector<8x128xf32>
    %83 = arith.addf %80, %82 : vector<8x128xf32>
    %84 = math.absf %83 : vector<8x128xf32>
    %cst_51 = arith.constant 5.000000e-01 : f32
    %85 = vector.broadcast %cst_51 : f32 to vector<8x128xf32>
    %86 = arith.cmpf ogt, %84, %85 : vector<8x128xf32>
    %cst_52 = arith.constant 0.000000e+00 : f32
    %87 = vector.broadcast %cst_52 : f32 to vector<8x128xf32>
    %88 = arith.select %86, %83, %87 : vector<8x128xi1>, vector<8x128xf32>
    %89 = arith.truncf %88 : vector<8x128xf32> to vector<8x128xbf16>
    %c0_53 = arith.constant 0 : index
    %c0_54 = arith.constant 0 : index
    %90 = vector.load %arg16[%c0_53, %c0_54] : memref<128x4xbf16, #tpu.memory_space<vmem>>, vector<128x4xbf16>
    %cst_55 = arith.constant dense<0.000000e+00> : vector<8x4xf32>
    %91 = tpu.matmul %89, %90, %cst_55 {dimension_numbers = #tpu.dot_dimension_numbers<[1], [0], [0], [1], [0, 0, 1, 1], [], []>} : vector<8x128xbf16>, vector<128x4xbf16>, vector<8x4xf32> -> vector<8x4xf32>
    %c0_56 = arith.constant 0 : index
    %c0_57 = arith.constant 0 : index
    %92 = vector.load %arg17[%c0_56, %c0_57] : memref<1x4xf32, #tpu.memory_space<vmem>>, vector<1x4xf32>
    %93 = vector.broadcast %92 : vector<1x4xf32> to vector<8x4xf32>
    %94 = arith.addf %91, %93 : vector<8x4xf32>
    %c0_58 = arith.constant 0 : index
    %c0_59 = arith.constant 0 : index
    %95 = vector.load %arg18[%c0_58, %c0_59] : memref<8x4xf32, #tpu.memory_space<vmem>>, vector<8x4xf32>
    tpu.vector_store %arg18[%c0_58, %c0_59], %94 {strides = array<i32>} : memref<8x4xf32, #tpu.memory_space<vmem>>, vector<8x4xf32>,
    return
  }
  func.func @transform_0(%arg0: i32) -> (i32, i32) {
    %c0_i32 = arith.constant 0 : i32
    %c0_i32_0 = arith.constant 0 : i32
    return %arg0, %c0_i32 : i32, i32
  }
  func.func @transform_1(%arg0: i32) -> (i32, i32) {
    %c0_i32 = arith.constant 0 : i32
    %c0_i32_0 = arith.constant 0 : i32
    %c0_i32_1 = arith.constant 0 : i32
    return %c0_i32, %c0_i32_0 : i32, i32
  }
  func.func @transform_2(%arg0: i32) -> (i32, i32) {
    %c0_i32 = arith.constant 0 : i32
    %c0_i32_0 = arith.constant 0 : i32
    %c0_i32_1 = arith.constant 0 : i32
    return %c0_i32, %c0_i32_0 : i32, i32
  }
  func.func @transform_3(%arg0: i32) -> (i32, i32) {
    %c0_i32 = arith.constant 0 : i32
    %c0_i32_0 = arith.constant 0 : i32
    %c0_i32_1 = arith.constant 0 : i32
    return %c0_i32, %c0_i32_0 : i32, i32
  }
  func.func @transform_4(%arg0: i32) -> (i32, i32) {
    %c0_i32 = arith.constant 0 : i32
    %c0_i32_0 = arith.constant 0 : i32
    %c0_i32_1 = arith.constant 0 : i32
    return %c0_i32, %c0_i32_0 : i32, i32
  }
  func.func @transform_5(%arg0: i32) -> (i32, i32) {
    %c0_i32 = arith.constant 0 : i32
    %c0_i32_0 = arith.constant 0 : i32
    %c0_i32_1 = arith.constant 0 : i32
    return %c0_i32, %c0_i32_0 : i32, i32
  }
  func.func @transform_6(%arg0: i32) -> (i32, i32) {
    %c0_i32 = arith.constant 0 : i32
    %c0_i32_0 = arith.constant 0 : i32
    %c0_i32_1 = arith.constant 0 : i32
    return %c0_i32, %c0_i32_0 : i32, i32
  }
  func.func @transform_7(%arg0: i32) -> (i32, i32) {
    %c0_i32 = arith.constant 0 : i32
    %c0_i32_0 = arith.constant 0 : i32
    %c0_i32_1 = arith.constant 0 : i32
    return %c0_i32, %c0_i32_0 : i32, i32
  }
  func.func @transform_8(%arg0: i32) -> (i32, i32) {
    %c0_i32 = arith.constant 0 : i32
    %c0_i32_0 = arith.constant 0 : i32
    %c0_i32_1 = arith.constant 0 : i32
    return %c0_i32, %c0_i32_0 : i32, i32
  }
  func.func @transform_9(%arg0: i32) -> (i32, i32) {
    %c0_i32 = arith.constant 0 : i32
    %c0_i32_0 = arith.constant 0 : i32
    %c0_i32_1 = arith.constant 0 : i32
    return %c0_i32, %c0_i32_0 : i32, i32
  }
  func.func @transform_10(%arg0: i32) -> (i32, i32) {
    %c0_i32 = arith.constant 0 : i32
    %c0_i32_0 = arith.constant 0 : i32
    %c0_i32_1 = arith.constant 0 : i32
    return %c0_i32, %c0_i32_0 : i32, i32
  }
  func.func @transform_11(%arg0: i32) -> (i32, i32) {
    %c0_i32 = arith.constant 0 : i32
    %c0_i32_0 = arith.constant 0 : i32
    %c0_i32_1 = arith.constant 0 : i32
    return %c0_i32, %c0_i32_0 : i32, i32
  }
  func.func @transform_12(%arg0: i32) -> (i32, i32) {
    %c0_i32 = arith.constant 0 : i32
    %c0_i32_0 = arith.constant 0 : i32
    %c0_i32_1 = arith.constant 0 : i32
    return %c0_i32, %c0_i32_0 : i32, i32
  }
  func.func @transform_13(%arg0: i32) -> (i32, i32) {
    %c0_i32 = arith.constant 0 : i32
    %c0_i32_0 = arith.constant 0 : i32
    %c0_i32_1 = arith.constant 0 : i32
    return %c0_i32, %c0_i32_0 : i32, i32
  }
  func.func @transform_14(%arg0: i32) -> (i32, i32) {
    %c0_i32 = arith.constant 0 : i32
    %c0_i32_0 = arith.constant 0 : i32
    %c0_i32_1 = arith.constant 0 : i32
    return %c0_i32, %c0_i32_0 : i32, i32
  }
  func.func @transform_15(%arg0: i32) -> (i32, i32) {
    %c0_i32 = arith.constant 0 : i32
    %c0_i32_0 = arith.constant 0 : i32
    %c0_i32_1 = arith.constant 0 : i32
    return %c0_i32, %c0_i32_0 : i32, i32
  }
  func.func @transform_16(%arg0: i32) -> (i32, i32) {
    %c0_i32 = arith.constant 0 : i32
    %c0_i32_0 = arith.constant 0 : i32
    %c0_i32_1 = arith.constant 0 : i32
    return %c0_i32, %c0_i32_0 : i32, i32
  }
  func.func @transform_17(%arg0: i32) -> (i32, i32) {
    %c0_i32 = arith.constant 0 : i32
    %c0_i32_0 = arith.constant 0 : i32
    return %arg0, %c0_i32 : i32, i32
  }
}

</mosaic_0001>

<llo_original>
// kernel: multiple_linear_regression.1
$region0: #{multiple_linear_regression.1}
  #allocation0 [shape = 'u32[]', space=smem, size = 0x4, offset = 0x4, fixed_abs, tag = 'smem constant byte address 0x4 - core index']
  #allocation1 [shape = 'u32[144,128]{1,0:T(1,128)}', space=vmem, size = 0x12000, scoped, tag = 'internal scratch']
  %s0 = inlined_call_operand.vmem [shape: bf16[8,16], index: 0, kind: input, shape index: {}]
  %s1 = inlined_call_operand.vmem [shape: bf16[16,128], index: 1, kind: input, shape index: {}]
  %s2 = inlined_call_operand.vmem [shape: f32[1,128], index: 2, kind: input, shape index: {}]
  %s3 = inlined_call_operand.vmem [shape: bf16[128,128], index: 3, kind: input, shape index: {}]
  %s4 = inlined_call_operand.vmem [shape: f32[1,128], index: 4, kind: input, shape index: {}]
  %s5 = inlined_call_operand.hbm [shape: bf16[128,128], index: 5, kind: input, shape index: {}]
  %s6 = inlined_call_operand.vmem [shape: f32[1,128], index: 6, kind: input, shape index: {}]
  %s7 = inlined_call_operand.hbm [shape: bf16[128,128], index: 7, kind: input, shape index: {}]
  %s8 = inlined_call_operand.vmem [shape: f32[1,128], index: 8, kind: input, shape index: {}]
  %s9 = inlined_call_operand.hbm [shape: bf16[128,128], index: 9, kind: input, shape index: {}]
  %s10 = inlined_call_operand.vmem [shape: f32[1,128], index: 10, kind: input, shape index: {}]
  %s11 = inlined_call_operand.hbm [shape: bf16[128,128], index: 11, kind: input, shape index: {}]
  %s12 = inlined_call_operand.vmem [shape: f32[1,128], index: 12, kind: input, shape index: {}]
  %s13 = inlined_call_operand.hbm [shape: bf16[128,128], index: 13, kind: input, shape index: {}]
  %s14 = inlined_call_operand.vmem [shape: f32[1,128], index: 14, kind: input, shape index: {}]
  %s15 = inlined_call_operand.vmem [shape: bf16[128,4], index: 15, kind: input, shape index: {}]
  %s16 = inlined_call_operand.vmem [shape: f32[1,4], index: 16, kind: input, shape index: {}]
  %s17 = inlined_call_operand.vmem [shape: f32[8,4], index: 17, kind: output, shape index: {}]
  %s18 = sld [smem:[#allocation0]]
  $region98: #{multiple_linear_regression.1} parent=0
    _
  %s20 = ssub.s32 1, %s18
  %s21 = scalar_select 0, %s20, %s18
  $region1: #{multiple_linear_regression.1} parent=0
    #allocation2 [shape = 'u8[32768]{0}', space=vmem, size = 0x8000, scoped, tag = 'input window, operand 5, single buffered']
    #allocation3 [shape = 's32[1]{0}', space=sflag, size = 0x4, scoped, tag = 'scoped memory for multiple_linear_regression.1']
    #allocation4 [shape = 'u8[32768]{0}', space=vmem, size = 0x8000, scoped, tag = 'input window, operand 7, single buffered']
    #allocation5 [shape = 's32[1]{0}', space=sflag, size = 0x4, scoped, tag = 'scoped memory for multiple_linear_regression.1']
    #allocation6 [shape = 'u8[32768]{0}', space=vmem, size = 0x8000, scoped, tag = 'input window, operand 9, single buffered']
    #allocation7 [shape = 'u8[32768]{0}', space=vmem, size = 0x8000, scoped, tag = 'input window, operand 11, single buffered']
    #allocation8 [shape = 's32[1]{0}', space=sflag, size = 0x4, scoped, tag = 'scoped memory for multiple_linear_regression.1']
    #allocation9 [shape = 'u8[32768]{0}', space=vmem, size = 0x8000, scoped, tag = 'input window, operand 13, single buffered']
    %22 = vsyncpa [#allocation3], 0
    %23 = vsyncpa [#allocation5], 0
    %24 = vsyncpa [#allocation8], 0
    // Predicated region
    $region2: #{multiple_linear_regression.1} parent=1 // pred_check
      _
    $region3: #{multiple_linear_regression.1} parent=1 // pred_check_branch
      %26 = sbr.rel (0) target = $region5
    $region4: #{multiple_linear_regression.1} parent=1 // pred_region
      _
    $region5: #{multiple_linear_regression.1} parent=1 // pred_fallthru
      _
    // Predicated region
    $region6: #{multiple_linear_regression.1} parent=1 // pred_check
      _
    $region7: #{multiple_linear_regression.1} parent=1 // pred_check_branch
      %28 = sbr.rel (0) target = $region9
    $region8: #{multiple_linear_regression.1} parent=1 // pred_region
      _
    $region9: #{multiple_linear_regression.1} parent=1 // pred_fallthru
      _
    // Predicated region
    $region10: #{multiple_linear_regression.1} parent=1 // pred_check
      _
    $region11: #{multiple_linear_regression.1} parent=1 // pred_check_branch
      %30 = sbr.rel (0) target = $region13
    $region12: #{multiple_linear_regression.1} parent=1 // pred_region
      _
    $region13: #{multiple_linear_regression.1} parent=1 // pred_fallthru
      _
    // Predicated region
    $region14: #{multiple_linear_regression.1} parent=1 // pred_check
      _
    $region15: #{multiple_linear_regression.1} parent=1 // pred_check_branch
      %32 = sbr.rel (0) target = $region17
    $region16: #{multiple_linear_regression.1} parent=1 // pred_region
      _
    $region17: #{multiple_linear_regression.1} parent=1 // pred_fallthru
      _
    // Predicated region
    $region18: #{multiple_linear_regression.1} parent=1 // pred_check
      _
    $region19: #{multiple_linear_regression.1} parent=1 // pred_check_branch
      %34 = sbr.rel (0) target = $region21
    $region20: #{multiple_linear_regression.1} parent=1 // pred_region
      _
    $region21: #{multiple_linear_regression.1} parent=1 // pred_fallthru
      _
    // Predicated region
    $region22: #{multiple_linear_regression.1} parent=1 // pred_check
      _
    $region23: #{multiple_linear_regression.1} parent=1 // pred_check_branch
      %36 = sbr.rel (0) target = $region25
    $region24: #{multiple_linear_regression.1} parent=1 // pred_region
      %s38 = ssub.s32 1024, 1024
      %39 = vsyncadd [#allocation3], %s38
      %s40 = sshll.u32 [#allocation2], 4
      %s41 = int_to_ptr.vmem [resolvable:$true] %s40
      %46 = dma.hbm_to_vmem [thread:$0]  %s5, 1024, %s41, [#allocation3], 64, 64, 4
    $region25: #{multiple_linear_regression.1} parent=1 // pred_fallthru
      _
    // Predicated region
    $region26: #{multiple_linear_regression.1} parent=1 // pred_check
      _
    $region27: #{multiple_linear_regression.1} parent=1 // pred_check_branch
      %48 = sbr.rel (0) target = $region29
    $region28: #{multiple_linear_regression.1} parent=1 // pred_region
      _
    $region29: #{multiple_linear_regression.1} parent=1 // pred_fallthru
      _
    // Predicated region
    $region30: #{multiple_linear_regression.1} parent=1 // pred_check
      _
    $region31: #{multiple_linear_regression.1} parent=1 // pred_check_branch
      %50 = sbr.rel (0) target = $region33
    $region32: #{multiple_linear_regression.1} parent=1 // pred_region
      %s52 = ssub.s32 1024, 1024
      %53 = vsyncadd [#allocation5], %s52
      %s54 = sshll.u32 [#allocation4], 4
      %s55 = int_to_ptr.vmem [resolvable:$true] %s54
      %60 = dma.hbm_to_vmem [thread:$0]  %s7, 1024, %s55, [#allocation5], 64, 64, 4
    $region33: #{multiple_linear_regression.1} parent=1 // pred_fallthru
      _
    // Predicated region
    $region34: #{multiple_linear_regression.1} parent=1 // pred_check
      _
    $region35: #{multiple_linear_regression.1} parent=1 // pred_check_branch
      %62 = sbr.rel (0) target = $region37
    $region36: #{multiple_linear_regression.1} parent=1 // pred_region
      _
    $region37: #{multiple_linear_regression.1} parent=1 // pred_fallthru
      _
    // Predicated region
    $region38: #{multiple_linear_regression.1} parent=1 // pred_check
      _
    $region39: #{multiple_linear_regression.1} parent=1 // pred_check_branch
      %64 = sbr.rel (0) target = $region41
    $region40: #{multiple_linear_regression.1} parent=1 // pred_region
      %s66 = ssub.s32 1024, 1024
      %67 = vsyncadd [#allocation5], %s66
      %s68 = sshll.u32 [#allocation6], 4
      %s69 = int_to_ptr.vmem [resolvable:$true] %s68
      %74 = dma.hbm_to_vmem [thread:$0]  %s9, 1024, %s69, [#allocation5], 64, 64, 4
    $region41: #{multiple_linear_regression.1} parent=1 // pred_fallthru
      _
    // Predicated region
    $region42: #{multiple_linear_regression.1} parent=1 // pred_check
      _
    $region43: #{multiple_linear_regression.1} parent=1 // pred_check_branch
      %76 = sbr.rel (0) target = $region45
    $region44: #{multiple_linear_regression.1} parent=1 // pred_region
      _
    $region45: #{multiple_linear_regression.1} parent=1 // pred_fallthru
      _
    // Predicated region
    $region46: #{multiple_linear_regression.1} parent=1 // pred_check
      _
    $region47: #{multiple_linear_regression.1} parent=1 // pred_check_branch
      %78 = sbr.rel (0) target = $region49
    $region48: #{multiple_linear_regression.1} parent=1 // pred_region
      %s80 = ssub.s32 1024, 1024
      %81 = vsyncadd [#allocation8], %s80
      %s82 = sshll.u32 [#allocation7], 4
      %s83 = int_to_ptr.vmem [resolvable:$true] %s82
      %88 = dma.hbm_to_vmem [thread:$0]  %s11, 1024, %s83, [#allocation8], 64, 64, 4
    $region49: #{multiple_linear_regression.1} parent=1 // pred_fallthru
      _
    // Predicated region
    $region50: #{multiple_linear_regression.1} parent=1 // pred_check
      _
    $region51: #{multiple_linear_regression.1} parent=1 // pred_check_branch
      %90 = sbr.rel (0) target = $region53
    $region52: #{multiple_linear_regression.1} parent=1 // pred_region
      _
    $region53: #{multiple_linear_regression.1} parent=1 // pred_fallthru
      _
    // Predicated region
    $region54: #{multiple_linear_regression.1} parent=1 // pred_check
      _
    $region55: #{multiple_linear_regression.1} parent=1 // pred_check_branch
      %92 = sbr.rel (0) target = $region57
    $region56: #{multiple_linear_regression.1} parent=1 // pred_region
      %s94 = ssub.s32 1024, 1024
      %95 = vsyncadd [#allocation8], %s94
      %s96 = sshll.u32 [#allocation9], 4
      %s97 = int_to_ptr.vmem [resolvable:$true] %s96
      %102 = dma.hbm_to_vmem [thread:$0]  %s13, 1024, %s97, [#allocation8], 64, 64, 4
    $region57: #{multiple_linear_regression.1} parent=1 // pred_fallthru
      _
    // Predicated region
    $region58: #{multiple_linear_regression.1} parent=1 // pred_check
      _
    $region59: #{multiple_linear_regression.1} parent=1 // pred_check_branch
      %104 = sbr.rel (0) target = $region61
    $region60: #{multiple_linear_regression.1} parent=1 // pred_region
      _
    $region61: #{multiple_linear_regression.1} parent=1 // pred_fallthru
      _
    // Predicated region
    $region62: #{multiple_linear_regression.1} parent=1 // pred_check
      _
    $region63: #{multiple_linear_regression.1} parent=1 // pred_check_branch
      %106 = sbr.rel (0) target = $region65
    $region64: #{multiple_linear_regression.1} parent=1 // pred_region
      _
    $region65: #{multiple_linear_regression.1} parent=1 // pred_fallthru
      _
    // Predicated region
    $region66: #{multiple_linear_regression.1} parent=1 // pred_check
      _
    $region67: #{multiple_linear_regression.1} parent=1 // pred_check_branch
      %108 = sbr.rel (0) target = $region69
    $region68: #{multiple_linear_regression.1} parent=1 // pred_region
      _
    $region69: #{multiple_linear_regression.1} parent=1 // pred_fallthru
      _
    // Predicated region
    $region70: #{multiple_linear_regression.1} parent=1 // pred_check
      _
    $region71: #{multiple_linear_regression.1} parent=1 // pred_check_branch
      %110 = sbr.rel (0) target = $region73
    $region72: #{multiple_linear_regression.1} parent=1 // pred_region
      %111 = dma.done [#allocation3], 1024
    $region73: #{multiple_linear_regression.1} parent=1 // pred_fallthru
      _
    // Predicated region
    $region74: #{multiple_linear_regression.1} parent=1 // pred_check
      _
    $region75: #{multiple_linear_regression.1} parent=1 // pred_check_branch
      %113 = sbr.rel (0) target = $region77
    $region76: #{multiple_linear_regression.1} parent=1 // pred_region
      %114 = dma.done [#allocation5], 1024
    $region77: #{multiple_linear_regression.1} parent=1 // pred_fallthru
      _
    // Predicated region
    $region78: #{multiple_linear_regression.1} parent=1 // pred_check
      _
    $region79: #{multiple_linear_regression.1} parent=1 // pred_check_branch
      %116 = sbr.rel (0) target = $region81
    $region80: #{multiple_linear_regression.1} parent=1 // pred_region
      %117 = dma.done [#allocation5], 1024
    $region81: #{multiple_linear_regression.1} parent=1 // pred_fallthru
      _
    // Predicated region
    $region82: #{multiple_linear_regression.1} parent=1 // pred_check
      _
    $region83: #{multiple_linear_regression.1} parent=1 // pred_check_branch
      %119 = sbr.rel (0) target = $region85
    $region84: #{multiple_linear_regression.1} parent=1 // pred_region
      %120 = dma.done [#allocation8], 1024
    $region85: #{multiple_linear_regression.1} parent=1 // pred_fallthru
      _
    // Predicated region
    $region86: #{multiple_linear_regression.1} parent=1 // pred_check
      _
    $region87: #{multiple_linear_regression.1} parent=1 // pred_check_branch
      %122 = sbr.rel (0) target = $region89
    $region88: #{multiple_linear_regression.1} parent=1 // pred_region
      %123 = dma.done [#allocation8], 1024
    $region89: #{multiple_linear_regression.1} parent=1 // pred_fallthru
      _
    %v125 = vld [vmem:[%s0] sm:$0xf]
    %v126 = vld [vmem:[%s1] sm:$0xf]
    %v127 = vld [vmem:[%s1 + $0x4] sm:$0xf]
    %v128 = vld [vmem:[%s2] sm:$0x1]
    %v130 = vlaneseq
    %v131 = vshrl.u32 %v130, 7
    %v132 = vsub.s32 0, %v131
    %v133 = vrot.slane %v128, %v132
    %v137 = vunpack.c.l.b16 %v126
    %v138 = vunpack.c.l.b16 %v127
    %v139 = vpack.c.b16 %v138, %v137
    %vm141 = vcmask 130048
    %v143 = vsel %vm141, %v125, 0
    %145 = vmatprep.subr.bf16.mxu0 0
    %146 = vmatpush1.bf16.msra.mxu0 %v139
    %147 = vmatprep.subr.bf16.mxu0 0
    %148 = vmatpush1.bf16.msra.mxu0 0
    %149 = vmatprep.subr.bf16.mxu0 0
    %150 = vmatpush1.bf16.msra.mxu0 0
    %151 = vmatprep.subr.bf16.mxu0 0
    %152 = vmatpush1.bf16.msra.mxu0 0
    %153 = vmatprep.subr.bf16.mxu0 0
    %154 = vmatpush1.bf16.msra.mxu0 0
    %155 = vmatprep.subr.bf16.mxu0 0
    %156 = vmatpush1.bf16.msra.mxu0 0
    %157 = vmatprep.subr.bf16.mxu0 0
    %158 = vmatpush1.bf16.msra.mxu0 0
    %159 = vmatprep.subr.bf16.mxu0 0
    %160 = vmatpush1.bf16.msra.mxu0 0
    %161 = vmatprep.subr.bf16.mxu0 0
    %162 = vmatpush1.bf16.msra.mxu0 0
    %163 = vmatprep.subr.bf16.mxu0 0
    %164 = vmatpush1.bf16.msra.mxu0 0
    %165 = vmatprep.subr.bf16.mxu0 0
    %166 = vmatpush1.bf16.msra.mxu0 0
    %167 = vmatprep.subr.bf16.mxu0 0
    %168 = vmatpush1.bf16.msra.mxu0 0
    %169 = vmatprep.subr.bf16.mxu0 0
    %170 = vmatpush1.bf16.msra.mxu0 0
    %171 = vmatprep.subr.bf16.mxu0 0
    %172 = vmatpush1.bf16.msra.mxu0 0
    %173 = vmatprep.subr.bf16.mxu0 0
    %174 = vmatpush1.bf16.msra.mxu0 0
    %175 = vmatprep.subr.bf16.mxu0 0
    %176 = vmatpush1.bf16.msra.mxu0 0
    %177 = vmatprep.mubr.bf16.mxu0 0
    %178 = vmatmul.mubr.bf16.gmra.mrb[0].mxu0 %v143
    %v179 = vpop.f32.mrb[0].mxu0
    %v180 = vadd.f32 %v133, %v179
    %v181 = vpop.f32.mrb[0].mxu0
    %v182 = vpop.f32.mrb[0].mxu0
    %v183 = vpop.f32.mrb[0].mxu0
    %184 = vdwg.mxu0
    %vm185 = vcmp.ge.f32.partialorder %v180, 0.0
    %v186 = vmul.f32 %v180, 0.22916667
    %v187 = vsel %vm185, %v180, %v186
    %v188 = vpack.c.bf16 %v187, %v187
    %v189 = vld [vmem:[%s3] sm:$0xf]
    %v190 = vld [vmem:[%s3 + $0x4] sm:$0xf]
    %v191 = vld [vmem:[%s3 + $0x8] sm:$0xf]
    %v192 = vld [vmem:[%s3 + $0xc] sm:$0xf]
    %v193 = vld [vmem:[%s3 + $0x10] sm:$0xf]
    %v194 = vld [vmem:[%s3 + $0x14] sm:$0xf]
    %v195 = vld [vmem:[%s3 + $0x18] sm:$0xf]
    %v196 = vld [vmem:[%s3 + $0x1c] sm:$0xf]
    %v197 = vld [vmem:[%s3 + $0x20] sm:$0xf]
    %v198 = vld [vmem:[%s3 + $0x24] sm:$0xf]
    %v199 = vld [vmem:[%s3 + $0x28] sm:$0xf]
    %v200 = vld [vmem:[%s3 + $0x2c] sm:$0xf]
    %v201 = vld [vmem:[%s3 + $0x30] sm:$0xf]
    %v202 = vld [vmem:[%s3 + $0x34] sm:$0xf]
    %v203 = vld [vmem:[%s3 + $0x38] sm:$0xf]
    %v204 = vld [vmem:[%s3 + $0x3c] sm:$0xf]
    %v205 = vld [vmem:[%s4] sm:$0x1]
    %v207 = vlaneseq
    %v208 = vshrl.u32 %v207, 7
    %v209 = vsub.s32 0, %v208
    %v210 = vrot.slane %v205, %v209
    %v228 = vunpack.c.l.b16 %v189
    %v229 = vunpack.c.l.b16 %v190
    %v230 = vunpack.c.l.b16 %v191
    %v231 = vunpack.c.l.b16 %v192
    %v232 = vunpack.c.l.b16 %v193
    %v233 = vunpack.c.l.b16 %v194
    %v234 = vunpack.c.l.b16 %v195
    %v235 = vunpack.c.l.b16 %v196
    %v236 = vunpack.c.l.b16 %v197
    %v237 = vunpack.c.l.b16 %v198
    %v238 = vunpack.c.l.b16 %v199
    %v239 = vunpack.c.l.b16 %v200
    %v240 = vunpack.c.l.b16 %v201
    %v241 = vunpack.c.l.b16 %v202
    %v242 = vunpack.c.l.b16 %v203
    %v243 = vunpack.c.l.b16 %v204
    %v244 = vpack.c.b16 %v229, %v228
    %v245 = vpack.c.b16 %v231, %v230
    %v246 = vpack.c.b16 %v233, %v232
    %v247 = vpack.c.b16 %v235, %v234
    %v248 = vpack.c.b16 %v237, %v236
    %v249 = vpack.c.b16 %v239, %v238
    %v250 = vpack.c.b16 %v241, %v240
    %v251 = vpack.c.b16 %v243, %v242
    %260 = vmatprep.subr.bf16.mxu0 0
    %261 = vmatpush1.bf16.msra.mxu0 %v244
    %262 = vmatprep.subr.bf16.mxu0 0
    %263 = vmatpush1.bf16.msra.mxu0 %v245
    %264 = vmatprep.subr.bf16.mxu0 0
    %265 = vmatpush1.bf16.msra.mxu0 %v246
    %266 = vmatprep.subr.bf16.mxu0 0
    %267 = vmatpush1.bf16.msra.mxu0 %v247
    %268 = vmatprep.subr.bf16.mxu0 0
    %269 = vmatpush1.bf16.msra.mxu0 %v248
    %270 = vmatprep.subr.bf16.mxu0 0
    %271 = vmatpush1.bf16.msra.mxu0 %v249
    %272 = vmatprep.subr.bf16.mxu0 0
    %273 = vmatpush1.bf16.msra.mxu0 %v250
    %274 = vmatprep.subr.bf16.mxu0 0
    %275 = vmatpush1.bf16.msra.mxu0 %v251
    %276 = vmatprep.subr.bf16.mxu0 0
    %277 = vmatpush1.bf16.msra.mxu0 0
    %278 = vmatprep.subr.bf16.mxu0 0
    %279 = vmatpush1.bf16.msra.mxu0 0
    %280 = vmatprep.subr.bf16.mxu0 0
    %281 = vmatpush1.bf16.msra.mxu0 0
    %282 = vmatprep.subr.bf16.mxu0 0
    %283 = vmatpush1.bf16.msra.mxu0 0
    %284 = vmatprep.subr.bf16.mxu0 0
    %285 = vmatpush1.bf16.msra.mxu0 0
    %286 = vmatprep.subr.bf16.mxu0 0
    %287 = vmatpush1.bf16.msra.mxu0 0
    %288 = vmatprep.subr.bf16.mxu0 0
    %289 = vmatpush1.bf16.msra.mxu0 0
    %290 = vmatprep.subr.bf16.mxu0 0
    %291 = vmatpush1.bf16.msra.mxu0 0
    %292 = vmatprep.mubr.bf16.mxu0 0
    %293 = vmatmul.mubr.bf16.gmra.mrb[0].mxu0 %v188
    %v294 = vpop.f32.mrb[0].mxu0
    %v295 = vadd.f32 %v210, %v294
    %v296 = vpop.f32.mrb[0].mxu0
    %v297 = vpop.f32.mrb[0].mxu0
    %v298 = vpop.f32.mrb[0].mxu0
    %299 = vdwg.mxu0
    %v300 = vsub.f32 0.0, %v295
    %v301 = vmul.f32 %v300, 1.442695
    %v302 = vpow.pop %v301
    %v303 = vadd.f32 %v302, 1.0
    %v304 = vrcp.pop %v303
    %v305 = vmul.f32 %v295, %v304
    %v306 = vpack.c.bf16 %v305, %v305
    %v307 = vld [vmem:[#allocation2] sm:$0xf]
    %v308 = vld [vmem:[#allocation2 + $0x4] sm:$0xf]
    %v309 = vld [vmem:[#allocation2 + $0x8] sm:$0xf]
    %v310 = vld [vmem:[#allocation2 + $0xc] sm:$0xf]
    %v311 = vld [vmem:[#allocation2 + $0x10] sm:$0xf]
    %v312 = vld [vmem:[#allocation2 + $0x14] sm:$0xf]
    %v313 = vld [vmem:[#allocation2 + $0x18] sm:$0xf]
    %v314 = vld [vmem:[#allocation2 + $0x1c] sm:$0xf]
    %v315 = vld [vmem:[#allocation2 + $0x20] sm:$0xf]
    %v316 = vld [vmem:[#allocation2 + $0x24] sm:$0xf]
    %v317 = vld [vmem:[#allocation2 + $0x28] sm:$0xf]
    %v318 = vld [vmem:[#allocation2 + $0x2c] sm:$0xf]
    %v319 = vld [vmem:[#allocation2 + $0x30] sm:$0xf]
    %v320 = vld [vmem:[#allocation2 + $0x34] sm:$0xf]
    %v321 = vld [vmem:[#allocation2 + $0x38] sm:$0xf]
    %v322 = vld [vmem:[#allocation2 + $0x3c] sm:$0xf]
    %v323 = vld [vmem:[%s6] sm:$0x1]
    %v325 = vlaneseq
    %v326 = vshrl.u32 %v325, 7
    %v327 = vsub.s32 0, %v326
    %v328 = vrot.slane %v323, %v327
    %v346 = vunpack.c.l.b16 %v307
    %v347 = vunpack.c.l.b16 %v308
    %v348 = vunpack.c.l.b16 %v309
    %v349 = vunpack.c.l.b16 %v310
    %v350 = vunpack.c.l.b16 %v311
    %v351 = vunpack.c.l.b16 %v312
    %v352 = vunpack.c.l.b16 %v313
    %v353 = vunpack.c.l.b16 %v314
    %v354 = vunpack.c.l.b16 %v315
    %v355 = vunpack.c.l.b16 %v316
    %v356 = vunpack.c.l.b16 %v317
    %v357 = vunpack.c.l.b16 %v318
    %v358 = vunpack.c.l.b16 %v319
    %v359 = vunpack.c.l.b16 %v320
    %v360 = vunpack.c.l.b16 %v321
    %v361 = vunpack.c.l.b16 %v322
    %v362 = vpack.c.b16 %v347, %v346
    %v363 = vpack.c.b16 %v349, %v348
    %v364 = vpack.c.b16 %v351, %v350
    %v365 = vpack.c.b16 %v353, %v352
    %v366 = vpack.c.b16 %v355, %v354
    %v367 = vpack.c.b16 %v357, %v356
    %v368 = vpack.c.b16 %v359, %v358
    %v369 = vpack.c.b16 %v361, %v360
    %378 = vmatprep.subr.bf16.mxu0 0
    %379 = vmatpush1.bf16.msra.mxu0 %v362
    %380 = vmatprep.subr.bf16.mxu0 0
    %381 = vmatpush1.bf16.msra.mxu0 %v363
    %382 = vmatprep.subr.bf16.mxu0 0
    %383 = vmatpush1.bf16.msra.mxu0 %v364
    %384 = vmatprep.subr.bf16.mxu0 0
    %385 = vmatpush1.bf16.msra.mxu0 %v365
    %386 = vmatprep.subr.bf16.mxu0 0
    %387 = vmatpush1.bf16.msra.mxu0 %v366
    %388 = vmatprep.subr.bf16.mxu0 0
    %389 = vmatpush1.bf16.msra.mxu0 %v367
    %390 = vmatprep.subr.bf16.mxu0 0
    %391 = vmatpush1.bf16.msra.mxu0 %v368
    %392 = vmatprep.subr.bf16.mxu0 0
    %393 = vmatpush1.bf16.msra.mxu0 %v369
    %394 = vmatprep.subr.bf16.mxu0 0
    %395 = vmatpush1.bf16.msra.mxu0 0
    %396 = vmatprep.subr.bf16.mxu0 0
    %397 = vmatpush1.bf16.msra.mxu0 0
    %398 = vmatprep.subr.bf16.mxu0 0
    %399 = vmatpush1.bf16.msra.mxu0 0
    %400 = vmatprep.subr.bf16.mxu0 0
    %401 = vmatpush1.bf16.msra.mxu0 0
    %402 = vmatprep.subr.bf16.mxu0 0
    %403 = vmatpush1.bf16.msra.mxu0 0
    %404 = vmatprep.subr.bf16.mxu0 0
    %405 = vmatpush1.bf16.msra.mxu0 0
    %406 = vmatprep.subr.bf16.mxu0 0
    %407 = vmatpush1.bf16.msra.mxu0 0
    %408 = vmatprep.subr.bf16.mxu0 0
    %409 = vmatpush1.bf16.msra.mxu0 0
    %410 = vmatprep.mubr.bf16.mxu0 0
    %411 = vmatmul.mubr.bf16.gmra.mrb[0].mxu0 %v306
    %v412 = vpop.f32.mrb[0].mxu0
    %v413 = vadd.f32 %v328, %v412
    %v414 = vpop.f32.mrb[0].mxu0
    %v415 = vpop.f32.mrb[0].mxu0
    %v416 = vpop.f32.mrb[0].mxu0
    %417 = vdwg.mxu0
    %vm418 = vcmp.gt.f32.partialorder %v413, 0.0
    %v419 = vmin.f32 %v413, 0.0
    %v420 = vmul.f32 %v419, 1.442695
    %v421 = vpow.pop %v420
    %v422 = vsub.f32 %v421, 1.0
    %v423 = vsel %vm418, %v413, %v422
    %v424 = vpack.c.bf16 %v423, %v423
    %v425 = vld [vmem:[#allocation4] sm:$0xf]
    %v426 = vld [vmem:[#allocation4 + $0x4] sm:$0xf]
    %v427 = vld [vmem:[#allocation4 + $0x8] sm:$0xf]
    %v428 = vld [vmem:[#allocation4 + $0xc] sm:$0xf]
    %v429 = vld [vmem:[#allocation4 + $0x10] sm:$0xf]
    %v430 = vld [vmem:[#allocation4 + $0x14] sm:$0xf]
    %v431 = vld [vmem:[#allocation4 + $0x18] sm:$0xf]
    %v432 = vld [vmem:[#allocation4 + $0x1c] sm:$0xf]
    %v433 = vld [vmem:[#allocation4 + $0x20] sm:$0xf]
    %v434 = vld [vmem:[#allocation4 + $0x24] sm:$0xf]
    %v435 = vld [vmem:[#allocation4 + $0x28] sm:$0xf]
    %v436 = vld [vmem:[#allocation4 + $0x2c] sm:$0xf]
    %v437 = vld [vmem:[#allocation4 + $0x30] sm:$0xf]
    %v438 = vld [vmem:[#allocation4 + $0x34] sm:$0xf]
    %v439 = vld [vmem:[#allocation4 + $0x38] sm:$0xf]
    %v440 = vld [vmem:[#allocation4 + $0x3c] sm:$0xf]
    %v441 = vld [vmem:[%s8] sm:$0x1]
    %v443 = vlaneseq
    %v444 = vshrl.u32 %v443, 7
    %v445 = vsub.s32 0, %v444
    %v446 = vrot.slane %v441, %v445
    %v464 = vunpack.c.l.b16 %v425
    %v465 = vunpack.c.l.b16 %v426
    %v466 = vunpack.c.l.b16 %v427
    %v467 = vunpack.c.l.b16 %v428
    %v468 = vunpack.c.l.b16 %v429
    %v469 = vunpack.c.l.b16 %v430
    %v470 = vunpack.c.l.b16 %v431
    %v471 = vunpack.c.l.b16 %v432
    %v472 = vunpack.c.l.b16 %v433
    %v473 = vunpack.c.l.b16 %v434
    %v474 = vunpack.c.l.b16 %v435
    %v475 = vunpack.c.l.b16 %v436
    %v476 = vunpack.c.l.b16 %v437
    %v477 = vunpack.c.l.b16 %v438
    %v478 = vunpack.c.l.b16 %v439
    %v479 = vunpack.c.l.b16 %v440
    %v480 = vpack.c.b16 %v465, %v464
    %v481 = vpack.c.b16 %v467, %v466
    %v482 = vpack.c.b16 %v469, %v468
    %v483 = vpack.c.b16 %v471, %v470
    %v484 = vpack.c.b16 %v473, %v472
    %v485 = vpack.c.b16 %v475, %v474
    %v486 = vpack.c.b16 %v477, %v476
    %v487 = vpack.c.b16 %v479, %v478
    %496 = vmatprep.subr.bf16.mxu0 0
    %497 = vmatpush1.bf16.msra.mxu0 %v480
    %498 = vmatprep.subr.bf16.mxu0 0
    %499 = vmatpush1.bf16.msra.mxu0 %v481
    %500 = vmatprep.subr.bf16.mxu0 0
    %501 = vmatpush1.bf16.msra.mxu0 %v482
    %502 = vmatprep.subr.bf16.mxu0 0
    %503 = vmatpush1.bf16.msra.mxu0 %v483
    %504 = vmatprep.subr.bf16.mxu0 0
    %505 = vmatpush1.bf16.msra.mxu0 %v484
    %506 = vmatprep.subr.bf16.mxu0 0
    %507 = vmatpush1.bf16.msra.mxu0 %v485
    %508 = vmatprep.subr.bf16.mxu0 0
    %509 = vmatpush1.bf16.msra.mxu0 %v486
    %510 = vmatprep.subr.bf16.mxu0 0
    %511 = vmatpush1.bf16.msra.mxu0 %v487
    %512 = vmatprep.subr.bf16.mxu0 0
    %513 = vmatpush1.bf16.msra.mxu0 0
    %514 = vmatprep.subr.bf16.mxu0 0
    %515 = vmatpush1.bf16.msra.mxu0 0
    %516 = vmatprep.subr.bf16.mxu0 0
    %517 = vmatpush1.bf16.msra.mxu0 0
    %518 = vmatprep.subr.bf16.mxu0 0
    %519 = vmatpush1.bf16.msra.mxu0 0
    %520 = vmatprep.subr.bf16.mxu0 0
    %521 = vmatpush1.bf16.msra.mxu0 0
    %522 = vmatprep.subr.bf16.mxu0 0
    %523 = vmatpush1.bf16.msra.mxu0 0
    %524 = vmatprep.subr.bf16.mxu0 0
    %525 = vmatpush1.bf16.msra.mxu0 0
    %526 = vmatprep.subr.bf16.mxu0 0
    %527 = vmatpush1.bf16.msra.mxu0 0
    %528 = vmatprep.mubr.bf16.mxu0 0
    %529 = vmatmul.mubr.bf16.gmra.mrb[0].mxu0 %v424
    %v530 = vpop.f32.mrb[0].mxu0
    %v531 = vadd.f32 %v446, %v530
    %v532 = vpop.f32.mrb[0].mxu0
    %v533 = vpop.f32.mrb[0].mxu0
    %v534 = vpop.f32.mrb[0].mxu0
    %535 = vdwg.mxu0
    %vm536 = vcmp.gt.f32.partialorder %v531, 0.0
    %v537 = vmin.f32 %v531, 0.0
    %v538 = vmul.f32 %v537, 1.442695
    %v539 = vpow.pop %v538
    %v540 = vsub.f32 %v539, 1.0
    %v541 = vsel %vm536, %v531, %v540
    %v542 = vpack.c.bf16 %v541, %v541
    %v543 = vld [vmem:[#allocation6] sm:$0xf]
    %v544 = vld [vmem:[#allocation6 + $0x4] sm:$0xf]
    %v545 = vld [vmem:[#allocation6 + $0x8] sm:$0xf]
    %v546 = vld [vmem:[#allocation6 + $0xc] sm:$0xf]
    %v547 = vld [vmem:[#allocation6 + $0x10] sm:$0xf]
    %v548 = vld [vmem:[#allocation6 + $0x14] sm:$0xf]
    %v549 = vld [vmem:[#allocation6 + $0x18] sm:$0xf]
    %v550 = vld [vmem:[#allocation6 + $0x1c] sm:$0xf]
    %v551 = vld [vmem:[#allocation6 + $0x20] sm:$0xf]
    %v552 = vld [vmem:[#allocation6 + $0x24] sm:$0xf]
    %v553 = vld [vmem:[#allocation6 + $0x28] sm:$0xf]
    %v554 = vld [vmem:[#allocation6 + $0x2c] sm:$0xf]
    %v555 = vld [vmem:[#allocation6 + $0x30] sm:$0xf]
    %v556 = vld [vmem:[#allocation6 + $0x34] sm:$0xf]
    %v557 = vld [vmem:[#allocation6 + $0x38] sm:$0xf]
    %v558 = vld [vmem:[#allocation6 + $0x3c] sm:$0xf]
    %v559 = vld [vmem:[%s10] sm:$0x1]
    %v561 = vlaneseq
    %v562 = vshrl.u32 %v561, 7
    %v563 = vsub.s32 0, %v562
    %v564 = vrot.slane %v559, %v563
    %v582 = vunpack.c.l.b16 %v543
    %v583 = vunpack.c.l.b16 %v544
    %v584 = vunpack.c.l.b16 %v545
    %v585 = vunpack.c.l.b16 %v546
    %v586 = vunpack.c.l.b16 %v547
    %v587 = vunpack.c.l.b16 %v548
    %v588 = vunpack.c.l.b16 %v549
    %v589 = vunpack.c.l.b16 %v550
    %v590 = vunpack.c.l.b16 %v551
    %v591 = vunpack.c.l.b16 %v552
    %v592 = vunpack.c.l.b16 %v553
    %v593 = vunpack.c.l.b16 %v554
    %v594 = vunpack.c.l.b16 %v555
    %v595 = vunpack.c.l.b16 %v556
    %v596 = vunpack.c.l.b16 %v557
    %v597 = vunpack.c.l.b16 %v558
    %v598 = vpack.c.b16 %v583, %v582
    %v599 = vpack.c.b16 %v585, %v584
    %v600 = vpack.c.b16 %v587, %v586
    %v601 = vpack.c.b16 %v589, %v588
    %v602 = vpack.c.b16 %v591, %v590
    %v603 = vpack.c.b16 %v593, %v592
    %v604 = vpack.c.b16 %v595, %v594
    %v605 = vpack.c.b16 %v597, %v596
    %614 = vmatprep.subr.bf16.mxu0 0
    %615 = vmatpush1.bf16.msra.mxu0 %v598
    %616 = vmatprep.subr.bf16.mxu0 0
    %617 = vmatpush1.bf16.msra.mxu0 %v599
    %618 = vmatprep.subr.bf16.mxu0 0
    %619 = vmatpush1.bf16.msra.mxu0 %v600
    %620 = vmatprep.subr.bf16.mxu0 0
    %621 = vmatpush1.bf16.msra.mxu0 %v601
    %622 = vmatprep.subr.bf16.mxu0 0
    %623 = vmatpush1.bf16.msra.mxu0 %v602
    %624 = vmatprep.subr.bf16.mxu0 0
    %625 = vmatpush1.bf16.msra.mxu0 %v603
    %626 = vmatprep.subr.bf16.mxu0 0
    %627 = vmatpush1.bf16.msra.mxu0 %v604
    %628 = vmatprep.subr.bf16.mxu0 0
    %629 = vmatpush1.bf16.msra.mxu0 %v605
    %630 = vmatprep.subr.bf16.mxu0 0
    %631 = vmatpush1.bf16.msra.mxu0 0
    %632 = vmatprep.subr.bf16.mxu0 0
    %633 = vmatpush1.bf16.msra.mxu0 0
    %634 = vmatprep.subr.bf16.mxu0 0
    %635 = vmatpush1.bf16.msra.mxu0 0
    %636 = vmatprep.subr.bf16.mxu0 0
    %637 = vmatpush1.bf16.msra.mxu0 0
    %638 = vmatprep.subr.bf16.mxu0 0
    %639 = vmatpush1.bf16.msra.mxu0 0
    %640 = vmatprep.subr.bf16.mxu0 0
    %641 = vmatpush1.bf16.msra.mxu0 0
    %642 = vmatprep.subr.bf16.mxu0 0
    %643 = vmatpush1.bf16.msra.mxu0 0
    %644 = vmatprep.subr.bf16.mxu0 0
    %645 = vmatpush1.bf16.msra.mxu0 0
    %646 = vmatprep.mubr.bf16.mxu0 0
    %647 = vmatmul.mubr.bf16.gmra.mrb[0].mxu0 %v542
    %v648 = vpop.f32.mrb[0].mxu0
    %v649 = vadd.f32 %v564, %v648
    %v650 = vpop.f32.mrb[0].mxu0
    %v651 = vpop.f32.mrb[0].mxu0
    %v652 = vpop.f32.mrb[0].mxu0
    %653 = vdwg.mxu0
    %v654 = vand.u32 2147483647, %v649
    %vm655 = vcmp.gt.f32.partialorder %v654, 0.5
    %v656 = vsel %vm655, %v649, 0.0
    %v657 = vpack.c.bf16 %v656, %v656
    %v658 = vld [vmem:[#allocation7] sm:$0xf]
    %v659 = vld [vmem:[#allocation7 + $0x4] sm:$0xf]
    %v660 = vld [vmem:[#allocation7 + $0x8] sm:$0xf]
    %v661 = vld [vmem:[#allocation7 + $0xc] sm:$0xf]
    %v662 = vld [vmem:[#allocation7 + $0x10] sm:$0xf]
    %v663 = vld [vmem:[#allocation7 + $0x14] sm:$0xf]
    %v664 = vld [vmem:[#allocation7 + $0x18] sm:$0xf]
    %v665 = vld [vmem:[#allocation7 + $0x1c] sm:$0xf]
    %v666 = vld [vmem:[#allocation7 + $0x20] sm:$0xf]
    %v667 = vld [vmem:[#allocation7 + $0x24] sm:$0xf]
    %v668 = vld [vmem:[#allocation7 + $0x28] sm:$0xf]
    %v669 = vld [vmem:[#allocation7 + $0x2c] sm:$0xf]
    %v670 = vld [vmem:[#allocation7 + $0x30] sm:$0xf]
    %v671 = vld [vmem:[#allocation7 + $0x34] sm:$0xf]
    %v672 = vld [vmem:[#allocation7 + $0x38] sm:$0xf]
    %v673 = vld [vmem:[#allocation7 + $0x3c] sm:$0xf]
    %v674 = vld [vmem:[%s12] sm:$0x1]
    %v676 = vlaneseq
    %v677 = vshrl.u32 %v676, 7
    %v678 = vsub.s32 0, %v677
    %v679 = vrot.slane %v674, %v678
    %v697 = vunpack.c.l.b16 %v658
    %v698 = vunpack.c.l.b16 %v659
    %v699 = vunpack.c.l.b16 %v660
    %v700 = vunpack.c.l.b16 %v661
    %v701 = vunpack.c.l.b16 %v662
    %v702 = vunpack.c.l.b16 %v663
    %v703 = vunpack.c.l.b16 %v664
    %v704 = vunpack.c.l.b16 %v665
    %v705 = vunpack.c.l.b16 %v666
    %v706 = vunpack.c.l.b16 %v667
    %v707 = vunpack.c.l.b16 %v668
    %v708 = vunpack.c.l.b16 %v669
    %v709 = vunpack.c.l.b16 %v670
    %v710 = vunpack.c.l.b16 %v671
    %v711 = vunpack.c.l.b16 %v672
    %v712 = vunpack.c.l.b16 %v673
    %v713 = vpack.c.b16 %v698, %v697
    %v714 = vpack.c.b16 %v700, %v699
    %v715 = vpack.c.b16 %v702, %v701
    %v716 = vpack.c.b16 %v704, %v703
    %v717 = vpack.c.b16 %v706, %v705
    %v718 = vpack.c.b16 %v708, %v707
    %v719 = vpack.c.b16 %v710, %v709
    %v720 = vpack.c.b16 %v712, %v711
    %729 = vmatprep.subr.bf16.mxu0 0
    %730 = vmatpush1.bf16.msra.mxu0 %v713
    %731 = vmatprep.subr.bf16.mxu0 0
    %732 = vmatpush1.bf16.msra.mxu0 %v714
    %733 = vmatprep.subr.bf16.mxu0 0
    %734 = vmatpush1.bf16.msra.mxu0 %v715
    %735 = vmatprep.subr.bf16.mxu0 0
    %736 = vmatpush1.bf16.msra.mxu0 %v716
    %737 = vmatprep.subr.bf16.mxu0 0
    %738 = vmatpush1.bf16.msra.mxu0 %v717
    %739 = vmatprep.subr.bf16.mxu0 0
    %740 = vmatpush1.bf16.msra.mxu0 %v718
    %741 = vmatprep.subr.bf16.mxu0 0
    %742 = vmatpush1.bf16.msra.mxu0 %v719
    %743 = vmatprep.subr.bf16.mxu0 0
    %744 = vmatpush1.bf16.msra.mxu0 %v720
    %745 = vmatprep.subr.bf16.mxu0 0
    %746 = vmatpush1.bf16.msra.mxu0 0
    %747 = vmatprep.subr.bf16.mxu0 0
    %748 = vmatpush1.bf16.msra.mxu0 0
    %749 = vmatprep.subr.bf16.mxu0 0
    %750 = vmatpush1.bf16.msra.mxu0 0
    %751 = vmatprep.subr.bf16.mxu0 0
    %752 = vmatpush1.bf16.msra.mxu0 0
    %753 = vmatprep.subr.bf16.mxu0 0
    %754 = vmatpush1.bf16.msra.mxu0 0
    %755 = vmatprep.subr.bf16.mxu0 0
    %756 = vmatpush1.bf16.msra.mxu0 0
    %757 = vmatprep.subr.bf16.mxu0 0
    %758 = vmatpush1.bf16.msra.mxu0 0
    %759 = vmatprep.subr.bf16.mxu0 0
    %760 = vmatpush1.bf16.msra.mxu0 0
    %761 = vmatprep.mubr.bf16.mxu0 0
    %762 = vmatmul.mubr.bf16.gmra.mrb[0].mxu0 %v657
    %v763 = vpop.f32.mrb[0].mxu0
    %v764 = vadd.f32 %v679, %v763
    %v765 = vpop.f32.mrb[0].mxu0
    %v766 = vpop.f32.mrb[0].mxu0
    %v767 = vpop.f32.mrb[0].mxu0
    %768 = vdwg.mxu0
    %v769 = vand.u32 2147483647, %v764
    %vm770 = vcmp.gt.f32.partialorder %v769, 0.5
    %v771 = vsel %vm770, %v764, 0.0
    %v772 = vpack.c.bf16 %v771, %v771
    %v773 = vld [vmem:[#allocation9] sm:$0xf]
    %v774 = vld [vmem:[#allocation9 + $0x4] sm:$0xf]
    %v775 = vld [vmem:[#allocation9 + $0x8] sm:$0xf]
    %v776 = vld [vmem:[#allocation9 + $0xc] sm:$0xf]
    %v777 = vld [vmem:[#allocation9 + $0x10] sm:$0xf]
    %v778 = vld [vmem:[#allocation9 + $0x14] sm:$0xf]
    %v779 = vld [vmem:[#allocation9 + $0x18] sm:$0xf]
    %v780 = vld [vmem:[#allocation9 + $0x1c] sm:$0xf]
    %v781 = vld [vmem:[#allocation9 + $0x20] sm:$0xf]
    %v782 = vld [vmem:[#allocation9 + $0x24] sm:$0xf]
    %v783 = vld [vmem:[#allocation9 + $0x28] sm:$0xf]
    %v784 = vld [vmem:[#allocation9 + $0x2c] sm:$0xf]
    %v785 = vld [vmem:[#allocation9 + $0x30] sm:$0xf]
    %v786 = vld [vmem:[#allocation9 + $0x34] sm:$0xf]
    %v787 = vld [vmem:[#allocation9 + $0x38] sm:$0xf]
    %v788 = vld [vmem:[#allocation9 + $0x3c] sm:$0xf]
    %v789 = vld [vmem:[%s14] sm:$0x1]
    %v791 = vlaneseq
    %v792 = vshrl.u32 %v791, 7
    %v793 = vsub.s32 0, %v792
    %v794 = vrot.slane %v789, %v793
    %v812 = vunpack.c.l.b16 %v773
    %v813 = vunpack.c.l.b16 %v774
    %v814 = vunpack.c.l.b16 %v775
    %v815 = vunpack.c.l.b16 %v776
    %v816 = vunpack.c.l.b16 %v777
    %v817 = vunpack.c.l.b16 %v778
    %v818 = vunpack.c.l.b16 %v779
    %v819 = vunpack.c.l.b16 %v780
    %v820 = vunpack.c.l.b16 %v781
    %v821 = vunpack.c.l.b16 %v782
    %v822 = vunpack.c.l.b16 %v783
    %v823 = vunpack.c.l.b16 %v784
    %v824 = vunpack.c.l.b16 %v785
    %v825 = vunpack.c.l.b16 %v786
    %v826 = vunpack.c.l.b16 %v787
    %v827 = vunpack.c.l.b16 %v788
    %v828 = vpack.c.b16 %v813, %v812
    %v829 = vpack.c.b16 %v815, %v814
    %v830 = vpack.c.b16 %v817, %v816
    %v831 = vpack.c.b16 %v819, %v818
    %v832 = vpack.c.b16 %v821, %v820
    %v833 = vpack.c.b16 %v823, %v822
    %v834 = vpack.c.b16 %v825, %v824
    %v835 = vpack.c.b16 %v827, %v826
    %844 = vmatprep.subr.bf16.mxu0 0
    %845 = vmatpush1.bf16.msra.mxu0 %v828
    %846 = vmatprep.subr.bf16.mxu0 0
    %847 = vmatpush1.bf16.msra.mxu0 %v829
    %848 = vmatprep.subr.bf16.mxu0 0
    %849 = vmatpush1.bf16.msra.mxu0 %v830
    %850 = vmatprep.subr.bf16.mxu0 0
    %851 = vmatpush1.bf16.msra.mxu0 %v831
    %852 = vmatprep.subr.bf16.mxu0 0
    %853 = vmatpush1.bf16.msra.mxu0 %v832
    %854 = vmatprep.subr.bf16.mxu0 0
    %855 = vmatpush1.bf16.msra.mxu0 %v833
    %856 = vmatprep.subr.bf16.mxu0 0
    %857 = vmatpush1.bf16.msra.mxu0 %v834
    %858 = vmatprep.subr.bf16.mxu0 0
    %859 = vmatpush1.bf16.msra.mxu0 %v835
    %860 = vmatprep.subr.bf16.mxu0 0
    %861 = vmatpush1.bf16.msra.mxu0 0
    %862 = vmatprep.subr.bf16.mxu0 0
    %863 = vmatpush1.bf16.msra.mxu0 0
    %864 = vmatprep.subr.bf16.mxu0 0
    %865 = vmatpush1.bf16.msra.mxu0 0
    %866 = vmatprep.subr.bf16.mxu0 0
    %867 = vmatpush1.bf16.msra.mxu0 0
    %868 = vmatprep.subr.bf16.mxu0 0
    %869 = vmatpush1.bf16.msra.mxu0 0
    %870 = vmatprep.subr.bf16.mxu0 0
    %871 = vmatpush1.bf16.msra.mxu0 0
    %872 = vmatprep.subr.bf16.mxu0 0
    %873 = vmatpush1.bf16.msra.mxu0 0
    %874 = vmatprep.subr.bf16.mxu0 0
    %875 = vmatpush1.bf16.msra.mxu0 0
    %876 = vmatprep.mubr.bf16.mxu0 0
    %877 = vmatmul.mubr.bf16.gmra.mrb[0].mxu0 %v772
    %v878 = vpop.f32.mrb[0].mxu0
    %v879 = vadd.f32 %v794, %v878
    %v880 = vpop.f32.mrb[0].mxu0
    %v881 = vpop.f32.mrb[0].mxu0
    %v882 = vpop.f32.mrb[0].mxu0
    %883 = vdwg.mxu0
    %v884 = vand.u32 2147483647, %v879
    %vm885 = vcmp.gt.f32.partialorder %v884, 0.5
    %v886 = vsel %vm885, %v879, 0.0
    %v887 = vpack.c.bf16 %v886, %v886
    %v888 = vld [vmem:[%s15] sm:$0xf]
    %v889 = vld [vmem:[%s15 + $0x4] sm:$0xf]
    %v890 = vld [vmem:[%s15 + $0x8] sm:$0xf]
    %v891 = vld [vmem:[%s15 + $0xc] sm:$0xf]
    %v892 = vld [vmem:[%s15 + $0x10] sm:$0xf]
    %v893 = vld [vmem:[%s15 + $0x14] sm:$0xf]
    %v894 = vld [vmem:[%s15 + $0x18] sm:$0xf]
    %v895 = vld [vmem:[%s15 + $0x1c] sm:$0xf]
    %v896 = vld [vmem:[%s15 + $0x20] sm:$0xf]
    %v897 = vld [vmem:[%s15 + $0x24] sm:$0xf]
    %v898 = vld [vmem:[%s15 + $0x28] sm:$0xf]
    %v899 = vld [vmem:[%s15 + $0x2c] sm:$0xf]
    %v900 = vld [vmem:[%s15 + $0x30] sm:$0xf]
    %v901 = vld [vmem:[%s15 + $0x34] sm:$0xf]
    %v902 = vld [vmem:[%s15 + $0x38] sm:$0xf]
    %v903 = vld [vmem:[%s15 + $0x3c] sm:$0xf]
    %v904 = vld [vmem:[%s16] sm:$0x1]
    %v906 = vlaneseq
    %v907 = vshrl.u32 %v906, 7
    %v908 = vsub.s32 0, %v907
    %v909 = vrot.slane %v904, %v908
    %v927 = vunpack.c.l.b16 %v888
    %v928 = vunpack.c.l.b16 %v889
    %v929 = vunpack.c.l.b16 %v890
    %v930 = vunpack.c.l.b16 %v891
    %v931 = vunpack.c.l.b16 %v892
    %v932 = vunpack.c.l.b16 %v893
    %v933 = vunpack.c.l.b16 %v894
    %v934 = vunpack.c.l.b16 %v895
    %v935 = vunpack.c.l.b16 %v896
    %v936 = vunpack.c.l.b16 %v897
    %v937 = vunpack.c.l.b16 %v898
    %v938 = vunpack.c.l.b16 %v899
    %v939 = vunpack.c.l.b16 %v900
    %v940 = vunpack.c.l.b16 %v901
    %v941 = vunpack.c.l.b16 %v902
    %v942 = vunpack.c.l.b16 %v903
    %v943 = vpack.c.b16 %v928, %v927
    %v944 = vpack.c.b16 %v930, %v929
    %v945 = vpack.c.b16 %v932, %v931
    %v946 = vpack.c.b16 %v934, %v933
    %v947 = vpack.c.b16 %v936, %v935
    %v948 = vpack.c.b16 %v938, %v937
    %v949 = vpack.c.b16 %v940, %v939
    %v950 = vpack.c.b16 %v942, %v941
    %959 = vmatprep.subr.bf16.mxu0 0
    %960 = vmatpush1.bf16.msra.mxu0 %v943
    %961 = vmatprep.subr.bf16.mxu0 0
    %962 = vmatpush1.bf16.msra.mxu0 %v944
    %963 = vmatprep.subr.bf16.mxu0 0
    %964 = vmatpush1.bf16.msra.mxu0 %v945
    %965 = vmatprep.subr.bf16.mxu0 0
    %966 = vmatpush1.bf16.msra.mxu0 %v946
    %967 = vmatprep.subr.bf16.mxu0 0
    %968 = vmatpush1.bf16.msra.mxu0 %v947
    %969 = vmatprep.subr.bf16.mxu0 0
    %970 = vmatpush1.bf16.msra.mxu0 %v948
    %971 = vmatprep.subr.bf16.mxu0 0
    %972 = vmatpush1.bf16.msra.mxu0 %v949
    %973 = vmatprep.subr.bf16.mxu0 0
    %974 = vmatpush1.bf16.msra.mxu0 %v950
    %975 = vmatprep.subr.bf16.mxu0 0
    %976 = vmatpush1.bf16.msra.mxu0 0
    %977 = vmatprep.subr.bf16.mxu0 0
    %978 = vmatpush1.bf16.msra.mxu0 0
    %979 = vmatprep.subr.bf16.mxu0 0
    %980 = vmatpush1.bf16.msra.mxu0 0
    %981 = vmatprep.subr.bf16.mxu0 0
    %982 = vmatpush1.bf16.msra.mxu0 0
    %983 = vmatprep.subr.bf16.mxu0 0
    %984 = vmatpush1.bf16.msra.mxu0 0
    %985 = vmatprep.subr.bf16.mxu0 0
    %986 = vmatpush1.bf16.msra.mxu0 0
    %987 = vmatprep.subr.bf16.mxu0 0
    %988 = vmatpush1.bf16.msra.mxu0 0
    %989 = vmatprep.subr.bf16.mxu0 0
    %990 = vmatpush1.bf16.msra.mxu0 0
    %991 = vmatprep.mubr.bf16.mxu0 0
    %992 = vmatmul.mubr.bf16.gmra.mrb[0].mxu0 %v887
    %v993 = vpop.f32.mrb[0].mxu0
    %v994 = vadd.f32 %v909, %v993
    %v995 = vpop.f32.mrb[0].mxu0
    %v996 = vpop.f32.mrb[0].mxu0
    %v997 = vpop.f32.mrb[0].mxu0
    %998 = vdwg.mxu0
    %vm999 = vcmask 31744
    %1000 = vst.msk [vmem:[%s17] sm:$0xff] %vm999, %v994
    // Predicated region
    $region90: #{multiple_linear_regression.1} parent=1 // pred_check
      _
    $region91: #{multiple_linear_regression.1} parent=1 // pred_check_branch
      %1002 = sbr.rel (0) target = $region93
    $region92: #{multiple_linear_regression.1} parent=1 // pred_region
      _
    $region93: #{multiple_linear_regression.1} parent=1 // pred_fallthru
      _
    // Predicated region
    $region94: #{multiple_linear_regression.1} parent=1 // pred_check
      _
    $region95: #{multiple_linear_regression.1} parent=1 // pred_check_branch
      %1004 = sbr.rel (0) target = $region97
    $region96: #{multiple_linear_regression.1} parent=1 // pred_region
      _
    $region97: #{multiple_linear_regression.1} parent=1 // pred_fallthru
      _
    %1005 = vsyncpa [#allocation3], 1
    %1006 = vsyncpa [#allocation5], 1
    %1007 = vsyncpa [#allocation8], 1

</llo_original>
